<compile_context>
chip_gen: v6e
topology: v6e:2x2x1
jax: 0.10.0
libtpu: 0.0.40
codegen_flags: <defaults>
</compile_context>

<pallas_src>
import jax
import jax.numpy as jnp
from jax import lax
from jax.experimental import pallas as pl
from jax.experimental.pallas import tpu as pltpu


def _round_up(v, m):
    return ((v + m - 1) // m) * m


# ---------------------------------------------------------------------------
# pltpu.roll rotation-convention probe (one tiny kernel, cached per process)
# ---------------------------------------------------------------------------
_ROLL_NUMPY = None


def _roll_matches_numpy() -> bool:
    """True iff pltpu.roll(x, s)[i] == x[(i - s) % n]  (np.roll convention)."""
    global _ROLL_NUMPY
    if _ROLL_NUMPY is None:
        def probe(x_ref, o_ref):
            o_ref[...] = pltpu.roll(x_ref[...], 3, axis=1)

        x = jnp.arange(8 * 128, dtype=jnp.float32).reshape(8, 128)
        y = jax.device_get(
            pl.pallas_call(
                probe, out_shape=jax.ShapeDtypeStruct((8, 128), jnp.float32))(x))
        if (y == jax.device_get(jnp.roll(x, 3, axis=1))).all():
            _ROLL_NUMPY = True
        elif (y == jax.device_get(jnp.roll(x, -3, axis=1))).all():
            _ROLL_NUMPY = False
        else:
            raise RuntimeError("could not determine pltpu.roll convention")
    return _ROLL_NUMPY


# ---------------------------------------------------------------------------
# fused GGRDB kernel
# ---------------------------------------------------------------------------
def _build_kernel(numofmodules, C, nD, G, numforrg, H, W, MW, roll_numpy):
    Wp = W + 1                                    # padded row stride
    # 3x3 tap offsets on the padded, flattened (H+1, W+1) image
    offs = [(kh - 1) * Wp + (kw - 1) for kh in range(3) for kw in range(3)]
    slot_nch = [C] + [G] * nD                     # channels held by each slot

    def shifted(block, d):
        """block rolled so out[p] = block[p + d] (wraps land in zero tail)."""
        if d == 0:
            return block
        s = (-d) % MW if roll_numpy else d % MW
        return pltpu.roll(block, s, axis=1)

    def kernel(x_ref, w_ref, valid_ref, o_ref, dense_ref, coll_ref):
        valid = valid_ref[...]                    # (8, MW) 1/0 f32 mask
        kidx = [0]                                # running weight-column index

        def wcol():                               # next (8,1) weight column
            c = w_ref[:, kidx[0]:kidx[0] + 1]
            kidx[0] += 1
            return c

        def conv3x3_relu(nslots):
            acc = jnp.zeros((8, MW), jnp.float32)
            for s in range(nslots):
                blk = dense_ref[s]                # (8, MW) slot block
                for d in offs:                    # 9 block rolls per slot
                    xt = shifted(blk, d)
                    for ci in range(slot_nch[s]):
                        acc = acc + xt[ci:ci + 1, :] * wcol()
            return jnp.maximum(acc, 0.0) * valid  # zero the pad lanes

        def conv1x1_slots(nslots):
            acc = wcol() * valid                  # bias (pads stay zero)
            for s in range(nslots):
                blk = dense_ref[s]
                for ci in range(slot_nch[s]):
                    acc = acc + blk[ci:ci + 1, :] * wcol()
            return acc

        for m in range(numofmodules):             # ---- GRDB modules ----
            modin = x_ref[0] if m == 0 else o_ref[0]
            for r in range(numforrg):             # ---- RDBs ----
                dense_ref[0] = modin if r == 0 else coll_ref[r - 1]
                for l in range(nD):               # dense 3x3 + ReLU, concat
                    dense_ref[l + 1] = conv3x3_relu(l + 1)
                # RDB 1x1 (with bias) + residual
                coll_ref[r] = conv1x1_slots(nD + 1) + dense_ref[0]
            # GRDB 1x1 (with bias) over the concatenated RDB outputs + residual
            acc = wcol() * valid
            for r in range(numforrg):
                blk = coll_ref[r]
                for ci in range(C):
                    acc = acc + blk[ci:ci + 1, :] * wcol()
            o_ref[0] = modin + acc
        o_ref[0] = x_ref[0] + o_ref[0]            # GGRDB residual, full store

    return kernel


# ---------------------------------------------------------------------------
# host-side packing
# ---------------------------------------------------------------------------
def _pack_weights(params, C, nD, G, numforrg):
    """One (8, NT) f32 panel of weight columns, in exact kernel consumption order."""
    slot_nch = [C] + [G] * nD
    slot_base = [0] + [C + i * G for i in range(nD)]

    def padrows(m):                               # (cout, k) -> (8, k)
        return jnp.pad(m.astype(jnp.float32), ((0, 8 - m.shape[0]), (0, 0)))

    blocks = []
    for gp in params:
        for rp in gp["rdbs"]:
            for l in range(nD):
                w = rp["dense"][l]                # (3, 3, cin, G) HWIO
                for s in range(l + 1):
                    sub = w[:, :, slot_base[s]:slot_base[s] + slot_nch[s], :]
                    blocks.append(padrows(sub.reshape(9 * slot_nch[s], G).T))
            blocks.append(padrows(rp["b1x1"][:, None]))
            blocks.append(padrows(rp["w1x1"].T))      # (C, C + nD*G)
        blocks.append(padrows(gp["b1x1"][:, None]))
        blocks.append(padrows(gp["w1x1"].T))          # (C, numforrg*C)
    wmat = jnp.concatenate(blocks, axis=1)
    nt = _round_up(wmat.shape[1], 128)
    return jnp.pad(wmat, ((0, 0), (0, nt - wmat.shape[1])))


def ggrdb_forward(x_nchw, params, roll_numpy=None):
    if roll_numpy is None:
        roll_numpy = _roll_matches_numpy()

    N, C, H, W = x_nchw.shape
    numofmodules = len(params)
    numforrg = len(params[0]["rdbs"])
    nD = len(params[0]["rdbs"][0]["dense"])
    G = params[0]["rdbs"][0]["dense"][0].shape[-1]
    assert C <= 8 and G <= 8, "kernel packs channels onto the 8 vreg sublanes"
    assert numofmodules >= 1

    Hp, Wp = H + 1, W + 1
    Mimg = Hp * Wp
    MW = _round_up(Mimg, 128)
    if MW - Mimg < Wp + 1:                        # tail must absorb neg. taps
        MW += 128

    # input: per-image, channel-on-sublane, padded-spatial-on-lane layout
    xp = jnp.pad(x_nchw.astype(jnp.float32),
                 ((0, 0), (0, 8 - C), (0, 1), (0, 1))).reshape(N, 8, Mimg)
    xp = jnp.pad(xp, ((0, 0), (0, 0), (0, MW - Mimg)))

    lane = jnp.arange(MW)
    valid = ((lane // Wp < H) & (lane % Wp < W)).astype(jnp.float32)
    valid = jnp.broadcast_to(valid[None, :], (8, MW))

    wmat = _pack_weights(params, C, nD, G, numforrg)
    nt = wmat.shape[1]

    kernel = _build_kernel(numofmodules, C, nD, G, numforrg, H, W, MW,
                           bool(roll_numpy))

    # advisory cost estimate for the XLA scheduler
    macs = 0
    for _ in range(numofmodules):
        for _ in range(numforrg):
            cin = C
            for _ in range(nD):
                macs += 9 * cin * G
                cin += G
            macs += cin * C
        macs += (C * numforrg) * C
    cost = pl.CostEstimate(
        flops=2 * macs * N * H * W, transcendentals=0,
        bytes_accessed=4 * (xp.size + wmat.size + valid.size + N * 8 * MW))

    out = pl.pallas_call(
        kernel,
        out_shape=jax.ShapeDtypeStruct((N, 8, MW), jnp.float32),
        grid_spec=pltpu.PrefetchScalarGridSpec(
            num_scalar_prefetch=0,
            grid=(N,),                                   # one image per step
            in_specs=[pl.BlockSpec((1, 8, MW), lambda n: (n, 0, 0)),
                      pl.BlockSpec((8, nt), lambda n: (0, 0)),
                      pl.BlockSpec((8, MW), lambda n: (0, 0))],
            out_specs=pl.BlockSpec((1, 8, MW), lambda n: (n, 0, 0)),
            scratch_shapes=[pltpu.VMEM((nD + 1, 8, MW), jnp.float32),
                            pltpu.VMEM((numforrg, 8, MW), jnp.float32)]),
        compiler_params=pltpu.CompilerParams(
            dimension_semantics=("parallel",)),
        cost_estimate=cost,
    )(xp, wmat, valid)

    y = out[:, :C, :Mimg].reshape(N, C, Hp, Wp)[:, :, :H, :W]
    return y.astype(x_nchw.dtype)


# ---------------------------------------------------------------------------
# plain-JAX reference (mirrors the PyTorch module) for validation
# ---------------------------------------------------------------------------
def _conv_ref(x, w_hwio, b=None, pad=0):
    out = lax.conv_general_dilated(
        x, w_hwio, window_strides=(1, 1), padding=[(pad, pad), (pad, pad)],
        dimension_numbers=("NCHW", "HWIO", "NCHW"),
        precision=lax.Precision.HIGHEST)
    if b is not None:
        out = out + b[None, :, None, None]
    return out


def ggrdb_reference(x, params):
    def rdb(xin, rp):
        out = xin
        for w in rp["dense"]:
            y = jax.nn.relu(_conv_ref(out, w, pad=1))
            out = jnp.concatenate([out, y], axis=1)
        return _conv_ref(out, rp["w1x1"][None, None], rp["b1x1"]) + xin

    def grdb(xin, gp):
        out = xin
        outs = []
        for rp in gp["rdbs"]:
            out = rdb(out, rp)
            outs.append(out)
        cat = jnp.concatenate(outs, axis=1)
        return xin + _conv_ref(cat, gp["w1x1"][None, None], gp["b1x1"])

    out = x
    for gp in params:
        out = grdb(out, gp)
    return x + out


# ---------------------------------------------------------------------------
# parameter init (HWIO 3x3 weights, (Cin,Cout) 1x1 weights, biases like torch)
# ---------------------------------------------------------------------------
def init_params(key, numofmodules, numofkernels, nDenselayer, growthRate, numforrg):
    params = []
    for _ in range(numofmodules):
        grdb = {"rdbs": []}
        for _ in range(numforrg):
            rdb = {"dense": []}
            c = numofkernels
            for _ in range(nDenselayer):
                key, sub = jax.random.split(key)
                w = jax.random.normal(sub, (3, 3, c, growthRate), jnp.float32)
                rdb["dense"].append(w * (0.1 / (9.0 * c) ** 0.5))
                c += growthRate
            key, sub = jax.random.split(key)
            rdb["w1x1"] = jax.random.normal(
                sub, (c, numofkernels), jnp.float32) * (0.1 / c ** 0.5)
            key, sub = jax.random.split(key)
            rdb["b1x1"] = jax.random.normal(sub, (numofkernels,), jnp.float32) * 0.01
            grdb["rdbs"].append(rdb)
        key, sub = jax.random.split(key)
        grdb["w1x1"] = jax.random.normal(
            sub, (numofkernels * numforrg, numofkernels), jnp.float32) * 0.05
        key, sub = jax.random.split(key)
        grdb["b1x1"] = jax.random.normal(sub, (numofkernels,), jnp.float32) * 0.01
        params.append(grdb)
    return params


# ---------------------------------------------------------------------------
# main
# ---------------------------------------------------------------------------
if __name__ == "__main__":
    # GGRDB(numofmodules=2, numofkernels=4, nDenselayer=2, growthRate=4, numforrg=2)
    numofmodules, numofkernels, nDenselayer, growthRate, numforrg = 2, 4, 2, 4, 2
    N, C, H, W = 2, numofkernels, 16, 16

    key = jax.random.PRNGKey(0)
    key, xkey = jax.random.split(key)
    x = jax.random.normal(xkey, (N, C, H, W), jnp.float32)      # NCHW like torch
    params = init_params(key, numofmodules, numofkernels, nDenselayer,
                         growthRate, numforrg)

    roll_numpy = _roll_matches_numpy()          # one-off build-time probe
    fwd = jax.jit(ggrdb_forward, static_argnums=(2,))
    y = jax.block_until_ready(fwd(x, params, roll_numpy))

    assert y.shape == x.shape, (y.shape, x.shape)
    assert y.dtype == x.dtype
    assert bool(jnp.all(jnp.isfinite(y)))

    y_ref = jax.block_until_ready(ggrdb_reference(x, params))
    max_err = float(jnp.max(jnp.abs(y - y_ref)))
    assert bool(jnp.allclose(y, y_ref, rtol=1e-3, atol=1e-3)), max_err

    print("KERNEL_OK")
</pallas_src>

<mosaic_0001>
module attributes {stable_mosaic.version = 11 : i64} {
  func.func @probe(%arg0: memref<8x128xf32, #tpu.memory_space<vmem>>, %arg1: memref<8x128xf32, #tpu.memory_space<vmem>>) attributes {dimension_semantics = [], scalar_prefetch = 0 : i64, scratch_operands = 0 : i64, tpu.core_type = #tpu.core_type<tc>} {
    %c0 = arith.constant 0 : index
    %c0_0 = arith.constant 0 : index
    %0 = vector.load %arg0[%c0, %c0_0] : memref<8x128xf32, #tpu.memory_space<vmem>>, vector<8x128xf32>
    %c3_i32 = arith.constant 3 : i32
    %1 = tpu.dynamic_rotate %0 by %c3_i32 dim 1 : vector<8x128xf32>, i32 -> vector<8x128xf32>
    %c0_1 = arith.constant 0 : index
    %c0_2 = arith.constant 0 : index
    %2 = vector.load %arg1[%c0_1, %c0_2] : memref<8x128xf32, #tpu.memory_space<vmem>>, vector<8x128xf32>
    tpu.vector_store %arg1[%c0_1, %c0_2], %1 {strides = array<i32>} : memref<8x128xf32, #tpu.memory_space<vmem>>, vector<8x128xf32>,
    return
  }
}

</mosaic_0001>

<llo_original>
// kernel: tpu_custom_call.1
$region0: #{tpu_custom_call.1}
  #allocation0 [shape = 'u32[]', space=smem, size = 0x4, offset = 0x4, fixed_abs, tag = 'smem constant byte address 0x4 - core index']
  #allocation1 [shape = 'u32[144,128]{1,0:T(1,128)}', space=vmem, size = 0x12000, scoped, tag = 'internal scratch']
  %s0 = inlined_call_operand.hbm [shape: f32[8,128], index: 0, kind: input, shape index: {}]
  %s1 = inlined_call_operand.hbm [shape: f32[8,128], index: 1, kind: output, shape index: {}]
  %s2 = sld [smem:[#allocation0]]
  $region18: #{tpu_custom_call.1} parent=0
    _
  %s4 = ssub.s32 1, %s2
  %s5 = scalar_select 0, %s4, %s2
  $region1: #{tpu_custom_call.1} parent=0
    #allocation2 [shape = 'u8[4096]{0}', space=vmem, size = 0x1000, scoped, tag = 'input window, operand 0, single buffered']
    #allocation3 [shape = 's32[1]{0}', space=sflag, size = 0x4, scoped, tag = 'scoped memory for tpu_custom_call.1']
    #allocation4 [shape = 's32[1]{0}', space=sflag, size = 0x4, scoped, tag = 'scoped memory for tpu_custom_call.1']
    #allocation5 [shape = 'u8[4096]{0}', space=vmem, size = 0x1000, scoped, tag = 'output window, operand 0, single buffered']
    %6 = vsyncpa [#allocation3], 0
    %7 = vsyncpa [#allocation4], 0
    // Predicated region
    $region2: #{tpu_custom_call.1} parent=1 // pred_check
      _
    $region3: #{tpu_custom_call.1} parent=1 // pred_check_branch
      %9 = sbr.rel (0) target = $region5
    $region4: #{tpu_custom_call.1} parent=1 // pred_region
      %s11 = ssub.s32 128, 128
      %12 = vsyncadd [#allocation3], %s11
      %s14 = sshll.u32 [#allocation2], 4
      %s15 = int_to_ptr.vmem [resolvable:$true] %s14
      %17 = dma.hbm_to_vmem [thread:$0]  %s0, 128, %s15, [#allocation3]
    $region5: #{tpu_custom_call.1} parent=1 // pred_fallthru
      _
    // Predicated region
    $region6: #{tpu_custom_call.1} parent=1 // pred_check
      _
    $region7: #{tpu_custom_call.1} parent=1 // pred_check_branch
      %19 = sbr.rel (0) target = $region9
    $region8: #{tpu_custom_call.1} parent=1 // pred_region
      %20 = dma.done [#allocation3], 128
    $region9: #{tpu_custom_call.1} parent=1 // pred_fallthru
      _
    %v21 = vld [vmem:[#allocation2] sm:$0xff]
    %22 = vrot.lane.b32.xlu0 %v21, 3
    %v23 = vpop.permute.xlu0 %22
    %24 = vst [vmem:[#allocation5] sm:$0xff] %v23
    // Predicated region
    $region10: #{tpu_custom_call.1} parent=1 // pred_check
      _
    $region11: #{tpu_custom_call.1} parent=1 // pred_check_branch
      %26 = sbr.rel (0) target = $region13
    $region12: #{tpu_custom_call.1} parent=1 // pred_region
      %s28 = ssub.s32 128, 128
      %29 = vsyncadd [#allocation4], %s28
      %s31 = sshll.u32 [#allocation5], 4
      %s32 = int_to_ptr.vmem [resolvable:$true] %s31
      %34 = dma.vmem_to_hbm [thread:$0]  %s32, 128, %s1, [#allocation4]
    $region13: #{tpu_custom_call.1} parent=1 // pred_fallthru
      _
    // Predicated region
    $region14: #{tpu_custom_call.1} parent=1 // pred_check
      _
    $region15: #{tpu_custom_call.1} parent=1 // pred_check_branch
      %36 = sbr.rel (0) target = $region17
    $region16: #{tpu_custom_call.1} parent=1 // pred_region
      %37 = dma.done [#allocation4], 128
    $region17: #{tpu_custom_call.1} parent=1 // pred_fallthru
      _
    %38 = vsyncpa [#allocation3], 1
    %39 = vsyncpa [#allocation4], 1

</llo_original>
